<compile_context>
chip_gen: v6e
topology: v6e:2x2x1
jax: 0.10.0
libtpu: 0.0.40
codegen_flags: <defaults>
</compile_context>

<pallas_src>
import functools

import jax
import jax.numpy as jnp
from jax.experimental import pallas as pl
from jax.experimental.pallas import tpu as pltpu

_LANE = 128


def _fused_mlp_kernel(*refs, activations):
    """refs = (x_ref, w0, b0, w1, b1, ..., out_ref). All tiles live in VMEM.

    Compute layout is batch-on-lanes so the only large dimension (batch) fills
    the MXU N dimension:
      x_ref : (batch_tile, in_features)  f32   (natural HBM layout)
      w_i   : (out_features, in_features) bf16 (PyTorch layout, resident)
      b_i   : (out_features, 1)           f32  (lane-broadcast over batch)
      out   : (batch_tile, act_dim)       f32  (natural HBM layout)
    """
    x_ref = refs[0]
    o_ref = refs[-1]
    wb_refs = refs[1:-1]
    n_layers = len(activations)

    # Fold the old wrapper input-transpose into the kernel: transpose in f32
    # (best-supported relayout), then cast once to bf16 for the MXU.
    h = jnp.transpose(x_ref[...]).astype(jnp.bfloat16)       # (in, tb) bf16

    for li, act in enumerate(activations):
        w = wb_refs[2 * li][...]                             # bf16 (out, in)
        b = wb_refs[2 * li + 1][...]                         # f32  (out, 1)
        # MXU: bf16 x bf16 -> f32 accumulation; batch fills the wide N dim.
        h = jnp.dot(w, h, preferred_element_type=jnp.float32) + b   # (out, tb) f32
        if act == "relu":
            h = jnp.maximum(h, 0.0)                          # VPU, f32 (v5e-safe)
        elif act == "tanh":
            h = jnp.tanh(h)                                  # EUP, f32
        elif act == "none":
            pass
        else:
            raise NotImplementedError(act)
        if li != n_layers - 1:
            # bf16 intermediates: halves live vregs; next matmul wants bf16.
            h = h.astype(jnp.bfloat16)

    # Fold the old wrapper output-transpose into the kernel: (act_dim, tb) ->
    # (tb, act_dim). The store is lane-short (act_dim=4) but the DMA into the
    # row-major (Bp, act_dim) output is contiguous and far cheaper than an
    # extra HBM read+write pass.
    o_ref[...] = jnp.transpose(h).astype(o_ref.dtype)


def _choose_batch_tile(batch, requested):
    padded = _LANE * pl.cdiv(batch, _LANE)
    if requested is not None:
        if requested % _LANE != 0:
            raise ValueError("batch_tile must be a multiple of 128 (lane width)")
        return int(min(requested, padded))   # clamp: never pad past the lane-rounded batch
    if padded <= _LANE:
        return _LANE
    # Aim for >=2 grid steps so the "parallel" axis shards across v7x's two
    # TensorCores; cap at 1024 (f32 (32, tb) intermediates start spilling vregs
    # beyond that). VMEM is a non-issue on all generations at these sizes.
    half = _LANE * pl.cdiv(padded // 2, _LANE)
    return int(min(1024, half))


def prepare_params(params):
    """Hoisted (one-time) param prep: bf16 weights, (out, 1) f32 biases."""
    prepped = []
    for w, b in params:
        w16 = jnp.asarray(w, jnp.float32).astype(jnp.bfloat16)    # (out, in) bf16
        b2d = jnp.asarray(b, jnp.float32).reshape(-1, 1)          # (out, 1)  f32
        prepped.append((w16, b2d))
    return prepped


def vpg_gaussian_policy_forward(x, prepared_params, activations, *, batch_tile=None):
    """Run the fused trunk+head MLP in a single Pallas kernel.

    x               : (B, obs_dim) float32 (natural layout, no wrapper transpose)
    prepared_params : output of prepare_params(); list of (W bf16 (out,in), b f32 (out,1))
    activations     : list of activation names, one per linear layer
    """
    B, obs_dim = x.shape
    out_dim = prepared_params[-1][0].shape[0]
    tb = _choose_batch_tile(B, batch_tile)
    num_steps = pl.cdiv(B, tb)
    Bp = tb * num_steps

    if Bp != B:
        # Remainder tile via zero-pad; padded rows produce garbage but are
        # sliced off below (do not switch to in-place writes without masking).
        x = jnp.pad(x, ((0, Bp - B), (0, 0)))

    kernel = functools.partial(_fused_mlp_kernel, activations=tuple(activations))

    in_specs = [pl.BlockSpec((tb, obs_dim), lambda i: (i, 0))]
    flat_params = []
    flops = 0
    transcendentals = 0
    weight_bytes = 0
    for (w16, b2d), act in zip(prepared_params, activations):
        # Weights/biases are tiny: constant index_map -> Pallas keeps them resident.
        # TODO(synk): mark these pipeline_mode=pl.Buffered(1) once single-buffered
        # specs are reliably supported; saves only a few KiB of VMEM here.
        in_specs.append(pl.BlockSpec(w16.shape, lambda i: (0, 0)))
        in_specs.append(pl.BlockSpec(b2d.shape, lambda i: (0, 0)))
        flat_params += [w16, b2d]
        flops += 2 * Bp * w16.shape[0] * w16.shape[1]
        if act == "tanh":
            transcendentals += Bp * w16.shape[0]
        weight_bytes += w16.size * 2 + b2d.size * 4

    out_spec = pl.BlockSpec((tb, out_dim), lambda i: (i, 0))

    cost = pl.CostEstimate(
        flops=int(flops),
        transcendentals=int(transcendentals),
        bytes_accessed=int(Bp * obs_dim * 4 + Bp * out_dim * 4 + weight_bytes),
    )

    out = pl.pallas_call(
        kernel,
        out_shape=jax.ShapeDtypeStruct((Bp, out_dim), jnp.float32),
        grid_spec=pltpu.PrefetchScalarGridSpec(
            num_scalar_prefetch=0,
            grid=(num_steps,),
            in_specs=in_specs,
            out_specs=out_spec,
        ),
        compiler_params=pltpu.CompilerParams(
            # Batch tiles are independent: pipelined + sharded across v7x's 2 TCs.
            dimension_semantics=("parallel",),
        ),
        cost_estimate=cost,
    )(x, *flat_params)

    return out[:B]                                           # (B, act_dim) f32


def init_linear(key, fan_in, fan_out):
    """Deterministic init mimicking PyTorch nn.Linear default (U(-1/sqrt(fan_in), +))."""
    kw, kb = jax.random.split(key)
    bound = 1.0 / jnp.sqrt(jnp.float32(fan_in))
    w = jax.random.uniform(kw, (fan_out, fan_in), jnp.float32, -bound, bound)
    b = jax.random.uniform(kb, (fan_out,), jnp.float32, -bound, bound)
    return w, b


def build_params_and_acts(key, obs_dim, trunk_layers, trunk_size,
                          head_layers, head_size, act_dim,
                          trunk_act="relu", head_act="relu"):
    """Reproduce build_model() layer structure of trunk + head."""
    params, acts = [], []
    prev = obs_dim
    for _ in range(trunk_layers):                     # trunk: Linear + act
        key, sub = jax.random.split(key)
        params.append(init_linear(sub, prev, trunk_size))
        acts.append(trunk_act)
        prev = trunk_size
    for _ in range(head_layers):                      # head hidden: Linear + act
        key, sub = jax.random.split(key)
        params.append(init_linear(sub, prev, head_size))
        acts.append(head_act)
        prev = head_size
    key, sub = jax.random.split(key)                  # gaussian output: Linear + tanh
    params.append(init_linear(sub, prev, act_dim))
    acts.append("tanh")
    # TODO(synk): ScaleLayer1d (torch.matmul(x, scale)) is env-dependent and only
    # inserted when |high-low|/2 != 1; omitted here for a [-1, 1] Box.
    return params, acts


def reference_forward(x, params, acts, *, mxu_dtype=jnp.float32):
    """Pure-JAX reference. With mxu_dtype=bf16 it mirrors the kernel's MXU dtypes."""
    h = x
    for (w, b), a in zip(params, acts):
        h = jnp.dot(h.astype(mxu_dtype), jnp.transpose(w).astype(mxu_dtype),
                    preferred_element_type=jnp.float32) + b
        if a == "relu":
            h = jnp.maximum(h, 0.0)
        elif a == "tanh":
            h = jnp.tanh(h)
    return h


if __name__ == "__main__":
    # Small, module-consistent shapes.
    obs_dim = 16       # Box observation space, shape (16,)
    trunk_layers = 2
    trunk_size = 32    # trunk.output_size
    head_layers = 2
    head_size = 32
    act_dim = 4        # env.action_space.shape[0], Box(-1, 1, (4,))

    key = jax.random.PRNGKey(0)
    key_x, key_x2, key_p = jax.random.split(key, 3)

    params, acts = build_params_and_acts(
        key_p, obs_dim, trunk_layers, trunk_size, head_layers, head_size, act_dim
    )
    prepped = prepare_params(params)   # hoisted one-time bf16 cast / bias reshape

    # cov (used only by .distribution(), not forward): diag(exp(std_logits * ones))
    std_logits = -0.5
    cov = jnp.diag(jnp.exp(std_logits * jnp.ones((act_dim,), jnp.float32)))
    del cov  # not part of forward()

    # --- small batch (single grid step, padded to one 128-lane-rounded tile) ---
    batch = 8
    x = jax.random.normal(key_x, (batch, obs_dim), jnp.float32)
    out = jax.block_until_ready(vpg_gaussian_policy_forward(x, prepped, acts))
    assert out.shape == (batch, act_dim)
    ref_bf16 = reference_forward(x, params, acts, mxu_dtype=jnp.bfloat16)
    ref_f32 = reference_forward(x, params, acts)
    assert jnp.allclose(out, ref_bf16, atol=1e-3, rtol=1e-3), "mismatch vs bf16 reference"
    assert jnp.allclose(out, ref_f32, atol=5e-2, rtol=5e-2), "mismatch vs f32 reference"

    # --- larger, non-multiple batch (exercises remainder padding + 2-step parallel grid) ---
    batch2 = 1000
    x2 = jax.random.normal(key_x2, (batch2, obs_dim), jnp.float32)
    out2 = jax.block_until_ready(
        vpg_gaussian_policy_forward(x2, prepped, acts, batch_tile=512))
    assert out2.shape == (batch2, act_dim)
    ref2 = reference_forward(x2, params, acts, mxu_dtype=jnp.bfloat16)
    assert jnp.allclose(out2, ref2, atol=1e-3, rtol=1e-3), "mismatch on padded batch"

    # --- default tile selection path (no explicit batch_tile) ---
    out3 = jax.block_until_ready(vpg_gaussian_policy_forward(x2, prepped, acts))
    assert out3.shape == (batch2, act_dim)
    assert jnp.allclose(out3, ref2, atol=1e-3, rtol=1e-3), "mismatch on default tiling"

    print("KERNEL_OK")
</pallas_src>

<mosaic_0001>
module attributes {stable_mosaic.version = 11 : i64} {
  func.func @_fused_mlp_kernel(%arg0: i32, %arg1: memref<128x16xf32, #tpu.memory_space<vmem>>, %arg2: memref<32x16xbf16, #tpu.memory_space<vmem>>, %arg3: memref<32x1xf32, #tpu.memory_space<vmem>>, %arg4: memref<32x32xbf16, #tpu.memory_space<vmem>>, %arg5: memref<32x1xf32, #tpu.memory_space<vmem>>, %arg6: memref<32x32xbf16, #tpu.memory_space<vmem>>, %arg7: memref<32x1xf32, #tpu.memory_space<vmem>>, %arg8: memref<32x32xbf16, #tpu.memory_space<vmem>>, %arg9: memref<32x1xf32, #tpu.memory_space<vmem>>, %arg10: memref<4x32xbf16, #tpu.memory_space<vmem>>, %arg11: memref<4x1xf32, #tpu.memory_space<vmem>>, %arg12: memref<128x4xf32, #tpu.memory_space<vmem>>) attributes {dimension_semantics = [#tpu.dimension_semantics<parallel>], iteration_bounds = array<i64: 1>, scalar_prefetch = 0 : i64, scratch_operands = 0 : i64, tpu.core_type = #tpu.core_type<tc>, window_params = [{transform_indices = @transform_0, window_bounds = array<i64: 128, 16>}, {pipeline_mode = #tpu.pipeline_mode<synchronous>, transform_indices = @transform_1, window_bounds = array<i64: 32, 16>}, {pipeline_mode = #tpu.pipeline_mode<synchronous>, transform_indices = @transform_2, window_bounds = array<i64: 32, 1>}, {pipeline_mode = #tpu.pipeline_mode<synchronous>, transform_indices = @transform_3, window_bounds = array<i64: 32, 32>}, {pipeline_mode = #tpu.pipeline_mode<synchronous>, transform_indices = @transform_4, window_bounds = array<i64: 32, 1>}, {pipeline_mode = #tpu.pipeline_mode<synchronous>, transform_indices = @transform_5, window_bounds = array<i64: 32, 32>}, {pipeline_mode = #tpu.pipeline_mode<synchronous>, transform_indices = @transform_6, window_bounds = array<i64: 32, 1>}, {pipeline_mode = #tpu.pipeline_mode<synchronous>, transform_indices = @transform_7, window_bounds = array<i64: 32, 32>}, {pipeline_mode = #tpu.pipeline_mode<synchronous>, transform_indices = @transform_8, window_bounds = array<i64: 32, 1>}, {pipeline_mode = #tpu.pipeline_mode<synchronous>, transform_indices = @transform_9, window_bounds = array<i64: 4, 32>}, {pipeline_mode = #tpu.pipeline_mode<synchronous>, transform_indices = @transform_10, window_bounds = array<i64: 4, 1>}, {transform_indices = @transform_11, window_bounds = array<i64: 128, 4>}]} {
    %c0 = arith.constant 0 : index
    %c0_0 = arith.constant 0 : index
    %0 = vector.load %arg1[%c0, %c0_0] : memref<128x16xf32, #tpu.memory_space<vmem>>, vector<128x16xf32>
    %1 = tpu.transpose %0, [1, 0] : vector<128x16xf32> -> vector<16x128xf32>
    %2 = arith.truncf %1 : vector<16x128xf32> to vector<16x128xbf16>
    %c0_1 = arith.constant 0 : index
    %c0_2 = arith.constant 0 : index
    %3 = vector.load %arg2[%c0_1, %c0_2] : memref<32x16xbf16, #tpu.memory_space<vmem>>, vector<32x16xbf16>
    %c0_3 = arith.constant 0 : index
    %c0_4 = arith.constant 0 : index
    %4 = vector.load %arg3[%c0_3, %c0_4] : memref<32x1xf32, #tpu.memory_space<vmem>>, vector<32x1xf32>
    %cst = arith.constant dense<0.000000e+00> : vector<32x128xf32>
    %5 = tpu.matmul %3, %2, %cst {dimension_numbers = #tpu.dot_dimension_numbers<[1], [0], [0], [1], [0, 0, 1, 1], [], []>} : vector<32x16xbf16>, vector<16x128xbf16>, vector<32x128xf32> -> vector<32x128xf32>
    %6 = vector.broadcast %4 : vector<32x1xf32> to vector<32x128xf32>
    %7 = arith.addf %5, %6 : vector<32x128xf32>
    %cst_5 = arith.constant 0.000000e+00 : f32
    %8 = vector.broadcast %cst_5 : f32 to vector<32x128xf32>
    %9 = arith.maximumf %7, %8 : vector<32x128xf32>
    %10 = arith.truncf %9 : vector<32x128xf32> to vector<32x128xbf16>
    %c0_6 = arith.constant 0 : index
    %c0_7 = arith.constant 0 : index
    %11 = vector.load %arg4[%c0_6, %c0_7] : memref<32x32xbf16, #tpu.memory_space<vmem>>, vector<32x32xbf16>
    %c0_8 = arith.constant 0 : index
    %c0_9 = arith.constant 0 : index
    %12 = vector.load %arg5[%c0_8, %c0_9] : memref<32x1xf32, #tpu.memory_space<vmem>>, vector<32x1xf32>
    %cst_10 = arith.constant dense<0.000000e+00> : vector<32x128xf32>
    %13 = tpu.matmul %11, %10, %cst_10 {dimension_numbers = #tpu.dot_dimension_numbers<[1], [0], [0], [1], [0, 0, 1, 1], [], []>} : vector<32x32xbf16>, vector<32x128xbf16>, vector<32x128xf32> -> vector<32x128xf32>
    %14 = vector.broadcast %12 : vector<32x1xf32> to vector<32x128xf32>
    %15 = arith.addf %13, %14 : vector<32x128xf32>
    %cst_11 = arith.constant 0.000000e+00 : f32
    %16 = vector.broadcast %cst_11 : f32 to vector<32x128xf32>
    %17 = arith.maximumf %15, %16 : vector<32x128xf32>
    %18 = arith.truncf %17 : vector<32x128xf32> to vector<32x128xbf16>
    %c0_12 = arith.constant 0 : index
    %c0_13 = arith.constant 0 : index
    %19 = vector.load %arg6[%c0_12, %c0_13] : memref<32x32xbf16, #tpu.memory_space<vmem>>, vector<32x32xbf16>
    %c0_14 = arith.constant 0 : index
    %c0_15 = arith.constant 0 : index
    %20 = vector.load %arg7[%c0_14, %c0_15] : memref<32x1xf32, #tpu.memory_space<vmem>>, vector<32x1xf32>
    %cst_16 = arith.constant dense<0.000000e+00> : vector<32x128xf32>
    %21 = tpu.matmul %19, %18, %cst_16 {dimension_numbers = #tpu.dot_dimension_numbers<[1], [0], [0], [1], [0, 0, 1, 1], [], []>} : vector<32x32xbf16>, vector<32x128xbf16>, vector<32x128xf32> -> vector<32x128xf32>
    %22 = vector.broadcast %20 : vector<32x1xf32> to vector<32x128xf32>
    %23 = arith.addf %21, %22 : vector<32x128xf32>
    %cst_17 = arith.constant 0.000000e+00 : f32
    %24 = vector.broadcast %cst_17 : f32 to vector<32x128xf32>
    %25 = arith.maximumf %23, %24 : vector<32x128xf32>
    %26 = arith.truncf %25 : vector<32x128xf32> to vector<32x128xbf16>
    %c0_18 = arith.constant 0 : index
    %c0_19 = arith.constant 0 : index
    %27 = vector.load %arg8[%c0_18, %c0_19] : memref<32x32xbf16, #tpu.memory_space<vmem>>, vector<32x32xbf16>
    %c0_20 = arith.constant 0 : index
    %c0_21 = arith.constant 0 : index
    %28 = vector.load %arg9[%c0_20, %c0_21] : memref<32x1xf32, #tpu.memory_space<vmem>>, vector<32x1xf32>
    %cst_22 = arith.constant dense<0.000000e+00> : vector<32x128xf32>
    %29 = tpu.matmul %27, %26, %cst_22 {dimension_numbers = #tpu.dot_dimension_numbers<[1], [0], [0], [1], [0, 0, 1, 1], [], []>} : vector<32x32xbf16>, vector<32x128xbf16>, vector<32x128xf32> -> vector<32x128xf32>
    %30 = vector.broadcast %28 : vector<32x1xf32> to vector<32x128xf32>
    %31 = arith.addf %29, %30 : vector<32x128xf32>
    %cst_23 = arith.constant 0.000000e+00 : f32
    %32 = vector.broadcast %cst_23 : f32 to vector<32x128xf32>
    %33 = arith.maximumf %31, %32 : vector<32x128xf32>
    %34 = arith.truncf %33 : vector<32x128xf32> to vector<32x128xbf16>
    %c0_24 = arith.constant 0 : index
    %c0_25 = arith.constant 0 : index
    %35 = vector.load %arg10[%c0_24, %c0_25] : memref<4x32xbf16, #tpu.memory_space<vmem>>, vector<4x32xbf16>
    %c0_26 = arith.constant 0 : index
    %c0_27 = arith.constant 0 : index
    %36 = vector.load %arg11[%c0_26, %c0_27] : memref<4x1xf32, #tpu.memory_space<vmem>>, vector<4x1xf32>
    %cst_28 = arith.constant dense<0.000000e+00> : vector<4x128xf32>
    %37 = tpu.matmul %35, %34, %cst_28 {dimension_numbers = #tpu.dot_dimension_numbers<[1], [0], [0], [1], [0, 0, 1, 1], [], []>} : vector<4x32xbf16>, vector<32x128xbf16>, vector<4x128xf32> -> vector<4x128xf32>
    %38 = vector.broadcast %36 : vector<4x1xf32> to vector<4x128xf32>
    %39 = arith.addf %37, %38 : vector<4x128xf32>
    %40 = math.tanh %39 : vector<4x128xf32>
    %41 = tpu.transpose %40, [1, 0] : vector<4x128xf32> -> vector<128x4xf32>
    %c0_29 = arith.constant 0 : index
    %c0_30 = arith.constant 0 : index
    %42 = vector.load %arg12[%c0_29, %c0_30] : memref<128x4xf32, #tpu.memory_space<vmem>>, vector<128x4xf32>
    tpu.vector_store %arg12[%c0_29, %c0_30], %41 {strides = array<i32>} : memref<128x4xf32, #tpu.memory_space<vmem>>, vector<128x4xf32>,
    return
  }
  func.func @transform_0(%arg0: i32) -> (i32, i32) {
    %c0_i32 = arith.constant 0 : i32
    %c0_i32_0 = arith.constant 0 : i32
    return %arg0, %c0_i32 : i32, i32
  }
  func.func @transform_1(%arg0: i32) -> (i32, i32) {
    %c0_i32 = arith.constant 0 : i32
    %c0_i32_0 = arith.constant 0 : i32
    %c0_i32_1 = arith.constant 0 : i32
    return %c0_i32, %c0_i32_0 : i32, i32
  }
  func.func @transform_2(%arg0: i32) -> (i32, i32) {
    %c0_i32 = arith.constant 0 : i32
    %c0_i32_0 = arith.constant 0 : i32
    %c0_i32_1 = arith.constant 0 : i32
    return %c0_i32, %c0_i32_0 : i32, i32
  }
  func.func @transform_3(%arg0: i32) -> (i32, i32) {
    %c0_i32 = arith.constant 0 : i32
    %c0_i32_0 = arith.constant 0 : i32
    %c0_i32_1 = arith.constant 0 : i32
    return %c0_i32, %c0_i32_0 : i32, i32
  }
  func.func @transform_4(%arg0: i32) -> (i32, i32) {
    %c0_i32 = arith.constant 0 : i32
    %c0_i32_0 = arith.constant 0 : i32
    %c0_i32_1 = arith.constant 0 : i32
    return %c0_i32, %c0_i32_0 : i32, i32
  }
  func.func @transform_5(%arg0: i32) -> (i32, i32) {
    %c0_i32 = arith.constant 0 : i32
    %c0_i32_0 = arith.constant 0 : i32
    %c0_i32_1 = arith.constant 0 : i32
    return %c0_i32, %c0_i32_0 : i32, i32
  }
  func.func @transform_6(%arg0: i32) -> (i32, i32) {
    %c0_i32 = arith.constant 0 : i32
    %c0_i32_0 = arith.constant 0 : i32
    %c0_i32_1 = arith.constant 0 : i32
    return %c0_i32, %c0_i32_0 : i32, i32
  }
  func.func @transform_7(%arg0: i32) -> (i32, i32) {
    %c0_i32 = arith.constant 0 : i32
    %c0_i32_0 = arith.constant 0 : i32
    %c0_i32_1 = arith.constant 0 : i32
    return %c0_i32, %c0_i32_0 : i32, i32
  }
  func.func @transform_8(%arg0: i32) -> (i32, i32) {
    %c0_i32 = arith.constant 0 : i32
    %c0_i32_0 = arith.constant 0 : i32
    %c0_i32_1 = arith.constant 0 : i32
    return %c0_i32, %c0_i32_0 : i32, i32
  }
  func.func @transform_9(%arg0: i32) -> (i32, i32) {
    %c0_i32 = arith.constant 0 : i32
    %c0_i32_0 = arith.constant 0 : i32
    %c0_i32_1 = arith.constant 0 : i32
    return %c0_i32, %c0_i32_0 : i32, i32
  }
  func.func @transform_10(%arg0: i32) -> (i32, i32) {
    %c0_i32 = arith.constant 0 : i32
    %c0_i32_0 = arith.constant 0 : i32
    %c0_i32_1 = arith.constant 0 : i32
    return %c0_i32, %c0_i32_0 : i32, i32
  }
  func.func @transform_11(%arg0: i32) -> (i32, i32) {
    %c0_i32 = arith.constant 0 : i32
    %c0_i32_0 = arith.constant 0 : i32
    return %arg0, %c0_i32 : i32, i32
  }
}

</mosaic_0001>

<llo_original>
// kernel: tpu_custom_call.1
$region0: #{tpu_custom_call.1}
  #allocation0 [shape = 'u32[]', space=smem, size = 0x4, offset = 0x4, fixed_abs, tag = 'smem constant byte address 0x4 - core index']
  #allocation1 [shape = 'u32[144,128]{1,0:T(1,128)}', space=vmem, size = 0x12000, scoped, tag = 'internal scratch']
  %s0 = inlined_call_operand.vmem [shape: f32[128,16], index: 0, kind: input, shape index: {}]
  %s1 = inlined_call_operand.vmem [shape: bf16[32,16], index: 1, kind: input, shape index: {}]
  %s2 = inlined_call_operand.vmem [shape: f32[32,1], index: 2, kind: input, shape index: {}]
  %s3 = inlined_call_operand.vmem [shape: bf16[32,32], index: 3, kind: input, shape index: {}]
  %s4 = inlined_call_operand.vmem [shape: f32[32,1], index: 4, kind: input, shape index: {}]
  %s5 = inlined_call_operand.vmem [shape: bf16[32,32], index: 5, kind: input, shape index: {}]
  %s6 = inlined_call_operand.vmem [shape: f32[32,1], index: 6, kind: input, shape index: {}]
  %s7 = inlined_call_operand.vmem [shape: bf16[32,32], index: 7, kind: input, shape index: {}]
  %s8 = inlined_call_operand.vmem [shape: f32[32,1], index: 8, kind: input, shape index: {}]
  %s9 = inlined_call_operand.vmem [shape: bf16[4,32], index: 9, kind: input, shape index: {}]
  %s10 = inlined_call_operand.vmem [shape: f32[4,1], index: 10, kind: input, shape index: {}]
  %s11 = inlined_call_operand.vmem [shape: f32[128,4], index: 11, kind: output, shape index: {}]
  %s12 = sld [smem:[#allocation0]]
  $region54: #{tpu_custom_call.1} parent=0
    _
  %s14 = ssub.s32 1, %s12
  %s15 = scalar_select 0, %s14, %s12
  // Predicated region
  $region2: #{tpu_custom_call.1} parent=0 // pred_check
    _
  $region3: #{tpu_custom_call.1} parent=0 // pred_check_branch
    %17 = sbr.rel (0) target = $region5
  $region4: #{tpu_custom_call.1} parent=0 // pred_region
    _
  $region5: #{tpu_custom_call.1} parent=0 // pred_fallthru
    _
  // Predicated region
  $region6: #{tpu_custom_call.1} parent=0 // pred_check
    _
  $region7: #{tpu_custom_call.1} parent=0 // pred_check_branch
    %19 = sbr.rel (0) target = $region9
  $region8: #{tpu_custom_call.1} parent=0 // pred_region
    _
  $region9: #{tpu_custom_call.1} parent=0 // pred_fallthru
    _
  // Predicated region
  $region10: #{tpu_custom_call.1} parent=0 // pred_check
    _
  $region11: #{tpu_custom_call.1} parent=0 // pred_check_branch
    %21 = sbr.rel (0) target = $region13
  $region12: #{tpu_custom_call.1} parent=0 // pred_region
    _
  $region13: #{tpu_custom_call.1} parent=0 // pred_fallthru
    _
  // Predicated region
  $region14: #{tpu_custom_call.1} parent=0 // pred_check
    _
  $region15: #{tpu_custom_call.1} parent=0 // pred_check_branch
    %23 = sbr.rel (0) target = $region17
  $region16: #{tpu_custom_call.1} parent=0 // pred_region
    _
  $region17: #{tpu_custom_call.1} parent=0 // pred_fallthru
    _
  // Predicated region
  $region18: #{tpu_custom_call.1} parent=0 // pred_check
    _
  $region19: #{tpu_custom_call.1} parent=0 // pred_check_branch
    %25 = sbr.rel (0) target = $region21
  $region20: #{tpu_custom_call.1} parent=0 // pred_region
    _
  $region21: #{tpu_custom_call.1} parent=0 // pred_fallthru
    _
  // Predicated region
  $region22: #{tpu_custom_call.1} parent=0 // pred_check
    _
  $region23: #{tpu_custom_call.1} parent=0 // pred_check_branch
    %27 = sbr.rel (0) target = $region25
  $region24: #{tpu_custom_call.1} parent=0 // pred_region
    _
  $region25: #{tpu_custom_call.1} parent=0 // pred_fallthru
    _
  // Predicated region
  $region26: #{tpu_custom_call.1} parent=0 // pred_check
    _
  $region27: #{tpu_custom_call.1} parent=0 // pred_check_branch
    %29 = sbr.rel (0) target = $region29
  $region28: #{tpu_custom_call.1} parent=0 // pred_region
    _
  $region29: #{tpu_custom_call.1} parent=0 // pred_fallthru
    _
  // Predicated region
  $region30: #{tpu_custom_call.1} parent=0 // pred_check
    _
  $region31: #{tpu_custom_call.1} parent=0 // pred_check_branch
    %31 = sbr.rel (0) target = $region33
  $region32: #{tpu_custom_call.1} parent=0 // pred_region
    _
  $region33: #{tpu_custom_call.1} parent=0 // pred_fallthru
    _
  // Predicated region
  $region34: #{tpu_custom_call.1} parent=0 // pred_check
    _
  $region35: #{tpu_custom_call.1} parent=0 // pred_check_branch
    %33 = sbr.rel (0) target = $region37
  $region36: #{tpu_custom_call.1} parent=0 // pred_region
    _
  $region37: #{tpu_custom_call.1} parent=0 // pred_fallthru
    _
  // Predicated region
  $region38: #{tpu_custom_call.1} parent=0 // pred_check
    _
  $region39: #{tpu_custom_call.1} parent=0 // pred_check_branch
    %35 = sbr.rel (0) target = $region41
  $region40: #{tpu_custom_call.1} parent=0 // pred_region
    _
  $region41: #{tpu_custom_call.1} parent=0 // pred_fallthru
    _
  // Predicated region
  $region42: #{tpu_custom_call.1} parent=0 // pred_check
    _
  $region43: #{tpu_custom_call.1} parent=0 // pred_check_branch
    %37 = sbr.rel (0) target = $region45
  $region44: #{tpu_custom_call.1} parent=0 // pred_region
    _
  $region45: #{tpu_custom_call.1} parent=0 // pred_fallthru
    _
  %v39 = vld [vmem:[%s0] sm:$0xff]
  %v40 = vld [vmem:[%s0 + $0x8] sm:$0xff]
  %v41 = vld [vmem:[%s0 + $0x10] sm:$0xff]
  %v42 = vld [vmem:[%s0 + $0x18] sm:$0xff]
  %v43 = vld [vmem:[%s0 + $0x20] sm:$0xff]
  %v44 = vld [vmem:[%s0 + $0x28] sm:$0xff]
  %v45 = vld [vmem:[%s0 + $0x30] sm:$0xff]
  %v46 = vld [vmem:[%s0 + $0x38] sm:$0xff]
  %v47 = vld [vmem:[%s0 + $0x40] sm:$0xff]
  %v48 = vld [vmem:[%s0 + $0x48] sm:$0xff]
  %v49 = vld [vmem:[%s0 + $0x50] sm:$0xff]
  %v50 = vld [vmem:[%s0 + $0x58] sm:$0xff]
  %v51 = vld [vmem:[%s0 + $0x60] sm:$0xff]
  %v52 = vld [vmem:[%s0 + $0x68] sm:$0xff]
  %v53 = vld [vmem:[%s0 + $0x70] sm:$0xff]
  %v54 = vld [vmem:[%s0 + $0x78] sm:$0xff]
  %55 = vxpose.xlu0.b32.start [1/16] %v39, 128
  %56 = vxpose.xlu0.b32.cont [2/16] %v40, 128
  %57 = vxpose.xlu0.b32.cont [3/16] %v41, 128
  %58 = vxpose.xlu0.b32.cont [4/16] %v42, 128
  %59 = vxpose.xlu0.b32.cont [5/16] %v43, 128
  %60 = vxpose.xlu0.b32.cont [6/16] %v44, 128
  %61 = vxpose.xlu0.b32.cont [7/16] %v45, 128
  %62 = vxpose.xlu0.b32.cont [8/16] %v46, 128
  %63 = vxpose.xlu0.b32.cont [9/16] %v47, 128
  %64 = vxpose.xlu0.b32.cont [10/16] %v48, 128
  %65 = vxpose.xlu0.b32.cont [11/16] %v49, 128
  %66 = vxpose.xlu0.b32.cont [12/16] %v50, 128
  %67 = vxpose.xlu0.b32.cont [13/16] %v51, 128
  %68 = vxpose.xlu0.b32.cont [14/16] %v52, 128
  %69 = vxpose.xlu0.b32.cont [15/16] %v53, 128
  %70 = vxpose.xlu0.b32.end [16/16] %v54, 128
  %v71 = vpop.trf.xlu0
  %v72 = vpop.trf.xlu0
  %v73 = vpop.trf.xlu0
  %v74 = vpop.trf.xlu0
  %v75 = vpop.trf.xlu0
  %v76 = vpop.trf.xlu0
  %v77 = vpop.trf.xlu0
  %v78 = vpop.trf.xlu0
  %v79 = vpop.trf.xlu0
  %v80 = vpop.trf.xlu0
  %v81 = vpop.trf.xlu0
  %v82 = vpop.trf.xlu0
  %v83 = vpop.trf.xlu0
  %v84 = vpop.trf.xlu0
  %v85 = vpop.trf.xlu0
  %v86 = vpop.trf.xlu0
  %v87 = vpack.c.bf16 %v72, %v71
  %v88 = vld [vmem:[%s1] sm:$0xf]
  %v89 = vld [vmem:[%s1 + $0x4] sm:$0xf]
  %v90 = vld [vmem:[%s1 + $0x8] sm:$0xf]
  %v91 = vld [vmem:[%s1 + $0xc] sm:$0xf]
  %v92 = vld [vmem:[%s2] sm:$0xff]
  %v93 = vld [vmem:[%s2 + $0x8] sm:$0xff]
  %v94 = vld [vmem:[%s2 + $0x10] sm:$0xff]
  %v95 = vld [vmem:[%s2 + $0x18] sm:$0xff]
  %97 = vset.pattern.permute.xlu0 0
  %98 = vperm.xlu0 %97, %v92
  %v99 = vpop.permute.xlu0 %98
  %102 = vset.pattern.permute.xlu0 0
  %103 = vperm.xlu0 %102, %v93
  %v104 = vpop.permute.xlu0 %103
  %107 = vset.pattern.permute.xlu0 0
  %108 = vperm.xlu0 %107, %v94
  %v109 = vpop.permute.xlu0 %108
  %112 = vset.pattern.permute.xlu0 0
  %113 = vperm.xlu0 %112, %v95
  %v114 = vpop.permute.xlu0 %113
  %v120 = vunpack.c.l.b16 %v88
  %v121 = vunpack.c.l.b16 %v89
  %v122 = vunpack.c.l.b16 %v90
  %v123 = vunpack.c.l.b16 %v91
  %v124 = vpack.c.b16 %v121, %v120
  %v125 = vpack.c.b16 %v123, %v122
  %vm126 = vcmask 130048
  %v128 = vsel %vm126, %v124, 0
  %v131 = vsel %vm126, %v125, 0
  %133 = vmatprep.subr.bf16.mxu0 0
  %134 = vmatpush1.bf16.msra.mxu0 0
  %135 = vmatprep.subr.bf16.mxu0 0
  %136 = vmatpush1.bf16.msra.mxu0 0
  %137 = vmatprep.subr.bf16.mxu0 0
  %138 = vmatpush1.bf16.msra.mxu0 0
  %139 = vmatprep.subr.bf16.mxu0 0
  %140 = vmatpush1.bf16.msra.mxu0 0
  %141 = vmatprep.subr.bf16.mxu0 0
  %142 = vmatpush1.bf16.msra.mxu0 0
  %143 = vmatprep.subr.bf16.mxu0 0
  %144 = vmatpush1.bf16.msra.mxu0 0
  %145 = vmatprep.subr.bf16.mxu0 0
  %146 = vmatpush1.bf16.msra.mxu0 0
  %147 = vmatprep.subr.bf16.mxu0 0
  %148 = vmatpush1.bf16.msra.mxu0 %v87
  %149 = vmatprep.subr.bf16.mxu0 0
  %150 = vmatpush2.bf16.msra.mxu0 0
  %151 = vmatprep.subr.bf16.mxu0 0
  %152 = vmatpush2.bf16.msra.mxu0 0
  %153 = vmatprep.subr.bf16.mxu0 0
  %154 = vmatpush2.bf16.msra.mxu0 0
  %155 = vmatprep.subr.bf16.mxu0 0
  %156 = vmatpush2.bf16.msra.mxu0 0
  %157 = vmatprep.subr.bf16.mxu0 0
  %158 = vmatpush2.bf16.msra.mxu0 0
  %159 = vmatprep.subr.bf16.mxu0 0
  %160 = vmatpush2.bf16.msra.mxu0 0
  %161 = vmatprep.subr.bf16.mxu0 0
  %162 = vmatpush2.bf16.msra.mxu0 0
  %163 = vmatprep.subr.bf16.mxu0 0
  %164 = vmatpush2.bf16.msra.mxu0 0
  %165 = vmatprep.mubr.bf16.mxu0 0
  %166 = vmatmul.mubr.bf16.gmra.mxu0 %v128
  %v167 = vpop.f32.mrf.mxu0
  %v168 = vadd.f32 %v99, %v167
  %v169 = vpop.f32.mrf.mxu0
  %v170 = vpop.f32.mrf.mxu0
  %v171 = vadd.f32 %v104, %v170
  %v172 = vpop.f32.mrf.mxu0
  %173 = vmatprep.mubr.bf16.mxu0 0
  %174 = vmatmul.mubr.bf16.gmra.mxu0 %v131
  %v175 = vpop.f32.mrf.mxu0
  %v176 = vadd.f32 %v109, %v175
  %v177 = vpop.f32.mrf.mxu0
  %v178 = vpop.f32.mrf.mxu0
  %v179 = vadd.f32 %v114, %v178
  %v180 = vpop.f32.mrf.mxu0
  %181 = vdwg.mxu0
  %v182 = vmax.f32 %v168, 0.0
  %v183 = vmax.f32 %v171, 0.0
  %v184 = vmax.f32 %v176, 0.0
  %v185 = vmax.f32 %v179, 0.0
  %v186 = vpack.c.bf16 %v183, %v182
  %v187 = vpack.c.bf16 %v185, %v184
  %v188 = vld [vmem:[%s3] sm:$0xf]
  %v189 = vld [vmem:[%s3 + $0x4] sm:$0xf]
  %v190 = vld [vmem:[%s3 + $0x8] sm:$0xf]
  %v191 = vld [vmem:[%s3 + $0xc] sm:$0xf]
  %v192 = vld [vmem:[%s4] sm:$0xff]
  %v193 = vld [vmem:[%s4 + $0x8] sm:$0xff]
  %v194 = vld [vmem:[%s4 + $0x10] sm:$0xff]
  %v195 = vld [vmem:[%s4 + $0x18] sm:$0xff]
  %197 = vset.pattern.permute.xlu0 0
  %198 = vperm.xlu0 %197, %v192
  %v199 = vpop.permute.xlu0 %198
  %202 = vset.pattern.permute.xlu0 0
  %203 = vperm.xlu0 %202, %v193
  %v204 = vpop.permute.xlu0 %203
  %207 = vset.pattern.permute.xlu0 0
  %208 = vperm.xlu0 %207, %v194
  %v209 = vpop.permute.xlu0 %208
  %212 = vset.pattern.permute.xlu0 0
  %213 = vperm.xlu0 %212, %v195
  %v214 = vpop.permute.xlu0 %213
  %v220 = vunpack.c.l.b16 %v188
  %v221 = vunpack.c.l.b16 %v189
  %v222 = vunpack.c.l.b16 %v190
  %v223 = vunpack.c.l.b16 %v191
  %v224 = vpack.c.b16 %v221, %v220
  %v225 = vpack.c.b16 %v223, %v222
  %vm226 = vcmask 261120
  %v228 = vsel %vm226, %v224, 0
  %v231 = vsel %vm226, %v225, 0
  %233 = vmatprep.subr.bf16.mxu0 0
  %234 = vmatpush1.bf16.msra.mxu0 0
  %235 = vmatprep.subr.bf16.mxu0 0
  %236 = vmatpush1.bf16.msra.mxu0 0
  %237 = vmatprep.subr.bf16.mxu0 0
  %238 = vmatpush1.bf16.msra.mxu0 0
  %239 = vmatprep.subr.bf16.mxu0 0
  %240 = vmatpush1.bf16.msra.mxu0 0
  %241 = vmatprep.subr.bf16.mxu0 0
  %242 = vmatpush1.bf16.msra.mxu0 0
  %243 = vmatprep.subr.bf16.mxu0 0
  %244 = vmatpush1.bf16.msra.mxu0 0
  %245 = vmatprep.subr.bf16.mxu0 0
  %246 = vmatpush1.bf16.msra.mxu0 %v187
  %247 = vmatprep.subr.bf16.mxu0 0
  %248 = vmatpush1.bf16.msra.mxu0 %v186
  %249 = vmatprep.subr.bf16.mxu0 0
  %250 = vmatpush2.bf16.msra.mxu0 0
  %251 = vmatprep.subr.bf16.mxu0 0
  %252 = vmatpush2.bf16.msra.mxu0 0
  %253 = vmatprep.subr.bf16.mxu0 0
  %254 = vmatpush2.bf16.msra.mxu0 0
  %255 = vmatprep.subr.bf16.mxu0 0
  %256 = vmatpush2.bf16.msra.mxu0 0
  %257 = vmatprep.subr.bf16.mxu0 0
  %258 = vmatpush2.bf16.msra.mxu0 0
  %259 = vmatprep.subr.bf16.mxu0 0
  %260 = vmatpush2.bf16.msra.mxu0 0
  %261 = vmatprep.subr.bf16.mxu0 0
  %262 = vmatpush2.bf16.msra.mxu0 0
  %263 = vmatprep.subr.bf16.mxu0 0
  %264 = vmatpush2.bf16.msra.mxu0 0
  %265 = vmatprep.mubr.bf16.mxu0 0
  %266 = vmatmul.mubr.bf16.gmra.mxu0 %v228
  %v267 = vpop.f32.mrf.mxu0
  %v268 = vadd.f32 %v199, %v267
  %v269 = vpop.f32.mrf.mxu0
  %v270 = vpop.f32.mrf.mxu0
  %v271 = vadd.f32 %v204, %v270
  %v272 = vpop.f32.mrf.mxu0
  %273 = vmatprep.mubr.bf16.mxu0 0
  %274 = vmatmul.mubr.bf16.gmra.mxu0 %v231
  %v275 = vpop.f32.mrf.mxu0
  %v276 = vadd.f32 %v209, %v275
  %v277 = vpop.f32.mrf.mxu0
  %v278 = vpop.f32.mrf.mxu0
  %v279 = vadd.f32 %v214, %v278
  %v280 = vpop.f32.mrf.mxu0
  %281 = vdwg.mxu0
  %v282 = vmax.f32 %v268, 0.0
  %v283 = vmax.f32 %v271, 0.0
  %v284 = vmax.f32 %v276, 0.0
  %v285 = vmax.f32 %v279, 0.0
  %v286 = vpack.c.bf16 %v283, %v282
  %v287 = vpack.c.bf16 %v285, %v284
  %v288 = vld [vmem:[%s5] sm:$0xf]
  %v289 = vld [vmem:[%s5 + $0x4] sm:$0xf]
  %v290 = vld [vmem:[%s5 + $0x8] sm:$0xf]
  %v291 = vld [vmem:[%s5 + $0xc] sm:$0xf]
  %v292 = vld [vmem:[%s6] sm:$0xff]
  %v293 = vld [vmem:[%s6 + $0x8] sm:$0xff]
  %v294 = vld [vmem:[%s6 + $0x10] sm:$0xff]
  %v295 = vld [vmem:[%s6 + $0x18] sm:$0xff]
  %297 = vset.pattern.permute.xlu0 0
  %298 = vperm.xlu0 %297, %v292
  %v299 = vpop.permute.xlu0 %298
  %302 = vset.pattern.permute.xlu0 0
  %303 = vperm.xlu0 %302, %v293
  %v304 = vpop.permute.xlu0 %303
  %307 = vset.pattern.permute.xlu0 0
  %308 = vperm.xlu0 %307, %v294
  %v309 = vpop.permute.xlu0 %308
  %312 = vset.pattern.permute.xlu0 0
  %313 = vperm.xlu0 %312, %v295
  %v314 = vpop.permute.xlu0 %313
  %v320 = vunpack.c.l.b16 %v288
  %v321 = vunpack.c.l.b16 %v289
  %v322 = vunpack.c.l.b16 %v290
  %v323 = vunpack.c.l.b16 %v291
  %v324 = vpack.c.b16 %v321, %v320
  %v325 = vpack.c.b16 %v323, %v322
  %v327 = vsel %vm226, %v324, 0
  %v330 = vsel %vm226, %v325, 0
  %332 = vmatprep.subr.bf16.mxu0 0
  %333 = vmatpush1.bf16.msra.mxu0 0
  %334 = vmatprep.subr.bf16.mxu0 0
  %335 = vmatpush1.bf16.msra.mxu0 0
  %336 = vmatprep.subr.bf16.mxu0 0
  %337 = vmatpush1.bf16.msra.mxu0 0
  %338 = vmatprep.subr.bf16.mxu0 0
  %339 = vmatpush1.bf16.msra.mxu0 0
  %340 = vmatprep.subr.bf16.mxu0 0
  %341 = vmatpush1.bf16.msra.mxu0 0
  %342 = vmatprep.subr.bf16.mxu0 0
  %343 = vmatpush1.bf16.msra.mxu0 0
  %344 = vmatprep.subr.bf16.mxu0 0
  %345 = vmatpush1.bf16.msra.mxu0 %v287
  %346 = vmatprep.subr.bf16.mxu0 0
  %347 = vmatpush1.bf16.msra.mxu0 %v286
  %348 = vmatprep.subr.bf16.mxu0 0
  %349 = vmatpush2.bf16.msra.mxu0 0
  %350 = vmatprep.subr.bf16.mxu0 0
  %351 = vmatpush2.bf16.msra.mxu0 0
  %352 = vmatprep.subr.bf16.mxu0 0
  %353 = vmatpush2.bf16.msra.mxu0 0
  %354 = vmatprep.subr.bf16.mxu0 0
  %355 = vmatpush2.bf16.msra.mxu0 0
  %356 = vmatprep.subr.bf16.mxu0 0
  %357 = vmatpush2.bf16.msra.mxu0 0
  %358 = vmatprep.subr.bf16.mxu0 0
  %359 = vmatpush2.bf16.msra.mxu0 0
  %360 = vmatprep.subr.bf16.mxu0 0
  %361 = vmatpush2.bf16.msra.mxu0 0
  %362 = vmatprep.subr.bf16.mxu0 0
  %363 = vmatpush2.bf16.msra.mxu0 0
  %364 = vmatprep.mubr.bf16.mxu0 0
  %365 = vmatmul.mubr.bf16.gmra.mxu0 %v327
  %v366 = vpop.f32.mrf.mxu0
  %v367 = vadd.f32 %v299, %v366
  %v368 = vpop.f32.mrf.mxu0
  %v369 = vpop.f32.mrf.mxu0
  %v370 = vadd.f32 %v304, %v369
  %v371 = vpop.f32.mrf.mxu0
  %372 = vmatprep.mubr.bf16.mxu0 0
  %373 = vmatmul.mubr.bf16.gmra.mxu0 %v330
  %v374 = vpop.f32.mrf.mxu0
  %v375 = vadd.f32 %v309, %v374
  %v376 = vpop.f32.mrf.mxu0
  %v377 = vpop.f32.mrf.mxu0
  %v378 = vadd.f32 %v314, %v377
  %v379 = vpop.f32.mrf.mxu0
  %380 = vdwg.mxu0
  %v381 = vmax.f32 %v367, 0.0
  %v382 = vmax.f32 %v370, 0.0
  %v383 = vmax.f32 %v375, 0.0
  %v384 = vmax.f32 %v378, 0.0
  %v385 = vpack.c.bf16 %v382, %v381
  %v386 = vpack.c.bf16 %v384, %v383
  %v387 = vld [vmem:[%s7] sm:$0xf]
  %v388 = vld [vmem:[%s7 + $0x4] sm:$0xf]
  %v389 = vld [vmem:[%s7 + $0x8] sm:$0xf]
  %v390 = vld [vmem:[%s7 + $0xc] sm:$0xf]
  %v391 = vld [vmem:[%s8] sm:$0xff]
  %v392 = vld [vmem:[%s8 + $0x8] sm:$0xff]
  %v393 = vld [vmem:[%s8 + $0x10] sm:$0xff]
  %v394 = vld [vmem:[%s8 + $0x18] sm:$0xff]
  %396 = vset.pattern.permute.xlu0 0
  %397 = vperm.xlu0 %396, %v391
  %v398 = vpop.permute.xlu0 %397
  %401 = vset.pattern.permute.xlu0 0
  %402 = vperm.xlu0 %401, %v392
  %v403 = vpop.permute.xlu0 %402
  %406 = vset.pattern.permute.xlu0 0
  %407 = vperm.xlu0 %406, %v393
  %v408 = vpop.permute.xlu0 %407
  %411 = vset.pattern.permute.xlu0 0
  %412 = vperm.xlu0 %411, %v394
  %v413 = vpop.permute.xlu0 %412
  %v419 = vunpack.c.l.b16 %v387
  %v420 = vunpack.c.l.b16 %v388
  %v421 = vunpack.c.l.b16 %v389
  %v422 = vunpack.c.l.b16 %v390
  %v423 = vpack.c.b16 %v420, %v419
  %v424 = vpack.c.b16 %v422, %v421
  %v426 = vsel %vm226, %v423, 0
  %v429 = vsel %vm226, %v424, 0
  %431 = vmatprep.subr.bf16.mxu0 0
  %432 = vmatpush1.bf16.msra.mxu0 0
  %433 = vmatprep.subr.bf16.mxu0 0
  %434 = vmatpush1.bf16.msra.mxu0 0
  %435 = vmatprep.subr.bf16.mxu0 0
  %436 = vmatpush1.bf16.msra.mxu0 0
  %437 = vmatprep.subr.bf16.mxu0 0
  %438 = vmatpush1.bf16.msra.mxu0 0
  %439 = vmatprep.subr.bf16.mxu0 0
  %440 = vmatpush1.bf16.msra.mxu0 0
  %441 = vmatprep.subr.bf16.mxu0 0
  %442 = vmatpush1.bf16.msra.mxu0 0
  %443 = vmatprep.subr.bf16.mxu0 0
  %444 = vmatpush1.bf16.msra.mxu0 %v386
  %445 = vmatprep.subr.bf16.mxu0 0
  %446 = vmatpush1.bf16.msra.mxu0 %v385
  %447 = vmatprep.subr.bf16.mxu0 0
  %448 = vmatpush2.bf16.msra.mxu0 0
  %449 = vmatprep.subr.bf16.mxu0 0
  %450 = vmatpush2.bf16.msra.mxu0 0
  %451 = vmatprep.subr.bf16.mxu0 0
  %452 = vmatpush2.bf16.msra.mxu0 0
  %453 = vmatprep.subr.bf16.mxu0 0
  %454 = vmatpush2.bf16.msra.mxu0 0
  %455 = vmatprep.subr.bf16.mxu0 0
  %456 = vmatpush2.bf16.msra.mxu0 0
  %457 = vmatprep.subr.bf16.mxu0 0
  %458 = vmatpush2.bf16.msra.mxu0 0
  %459 = vmatprep.subr.bf16.mxu0 0
  %460 = vmatpush2.bf16.msra.mxu0 0
  %461 = vmatprep.subr.bf16.mxu0 0
  %462 = vmatpush2.bf16.msra.mxu0 0
  %463 = vmatprep.mubr.bf16.mxu0 0
  %464 = vmatmul.mubr.bf16.gmra.mxu0 %v426
  %v465 = vpop.f32.mrf.mxu0
  %v466 = vadd.f32 %v398, %v465
  %v467 = vpop.f32.mrf.mxu0
  %v468 = vpop.f32.mrf.mxu0
  %v469 = vadd.f32 %v403, %v468
  %v470 = vpop.f32.mrf.mxu0
  %471 = vmatprep.mubr.bf16.mxu0 0
  %472 = vmatmul.mubr.bf16.gmra.mxu0 %v429
  %v473 = vpop.f32.mrf.mxu0
  %v474 = vadd.f32 %v408, %v473
  %v475 = vpop.f32.mrf.mxu0
  %v476 = vpop.f32.mrf.mxu0
  %v477 = vadd.f32 %v413, %v476
  %v478 = vpop.f32.mrf.mxu0
  %479 = vdwg.mxu0
  %v480 = vmax.f32 %v466, 0.0
  %v481 = vmax.f32 %v469, 0.0
  %v482 = vmax.f32 %v474, 0.0
  %v483 = vmax.f32 %v477, 0.0
  %v484 = vpack.c.bf16 %v481, %v480
  %v485 = vpack.c.bf16 %v483, %v482
  %v486 = vld [vmem:[%s9] sm:$0x3]
  %v487 = vld [vmem:[%s10] sm:$0xf]
  %489 = vset.pattern.permute.xlu0 0
  %490 = vperm.xlu0 %489, %v487
  %v491 = vpop.permute.xlu0 %490
  %v494 = vsel %vm226, %v486, 0
  %496 = vmatprep.subr.bf16.mxu0 0
  %497 = vmatpush1.bf16.msra.mxu0 0
  %498 = vmatprep.subr.bf16.mxu0 0
  %499 = vmatpush1.bf16.msra.mxu0 0
  %500 = vmatprep.subr.bf16.mxu0 0
  %501 = vmatpush1.bf16.msra.mxu0 0
  %502 = vmatprep.subr.bf16.mxu0 0
  %503 = vmatpush1.bf16.msra.mxu0 0
  %504 = vmatprep.subr.bf16.mxu0 0
  %505 = vmatpush1.bf16.msra.mxu0 0
  %506 = vmatprep.subr.bf16.mxu0 0
  %507 = vmatpush1.bf16.msra.mxu0 0
  %508 = vmatprep.subr.bf16.mxu0 0
  %509 = vmatpush1.bf16.msra.mxu0 %v485
  %510 = vmatprep.subr.bf16.mxu0 0
  %511 = vmatpush1.bf16.msra.mxu0 %v484
  %512 = vmatprep.subr.bf16.mxu0 0
  %513 = vmatpush2.bf16.msra.mxu0 0
  %514 = vmatprep.subr.bf16.mxu0 0
  %515 = vmatpush2.bf16.msra.mxu0 0
  %516 = vmatprep.subr.bf16.mxu0 0
  %517 = vmatpush2.bf16.msra.mxu0 0
  %518 = vmatprep.subr.bf16.mxu0 0
  %519 = vmatpush2.bf16.msra.mxu0 0
  %520 = vmatprep.subr.bf16.mxu0 0
  %521 = vmatpush2.bf16.msra.mxu0 0
  %522 = vmatprep.subr.bf16.mxu0 0
  %523 = vmatpush2.bf16.msra.mxu0 0
  %524 = vmatprep.subr.bf16.mxu0 0
  %525 = vmatpush2.bf16.msra.mxu0 0
  %526 = vmatprep.subr.bf16.mxu0 0
  %527 = vmatpush2.bf16.msra.mxu0 0
  %528 = vmatprep.mubr.bf16.mxu0 0
  %529 = vmatmul.mubr.bf16.gmra.mxu0 %v494
  %v530 = vpop.f32.mrf.mxu0
  %v531 = vadd.f32 %v491, %v530
  %v532 = vpop.f32.mrf.mxu0
  %v533 = vpop.f32.mrf.mxu0
  %v534 = vpop.f32.mrf.mxu0
  %535 = vdwg.mxu0
  %v536 = vtanh.pop %v531
  %537 = vxpose.xlu0.b32.start [1/16] %v536, 128
  %538 = vxpose.xlu0.b32.cont [2/16] 0.0, 128
  %539 = vxpose.xlu0.b32.cont [3/16] 0.0, 128
  %540 = vxpose.xlu0.b32.cont [4/16] 0.0, 128
  %541 = vxpose.xlu0.b32.cont [5/16] 0.0, 128
  %542 = vxpose.xlu0.b32.cont [6/16] 0.0, 128
  %543 = vxpose.xlu0.b32.cont [7/16] 0.0, 128
  %544 = vxpose.xlu0.b32.cont [8/16] 0.0, 128
  %545 = vxpose.xlu0.b32.cont [9/16] 0.0, 128
  %546 = vxpose.xlu0.b32.cont [10/16] 0.0, 128
  %547 = vxpose.xlu0.b32.cont [11/16] 0.0, 128
  %548 = vxpose.xlu0.b32.cont [12/16] 0.0, 128
  %549 = vxpose.xlu0.b32.cont [13/16] 0.0, 128
  %550 = vxpose.xlu0.b32.cont [14/16] 0.0, 128
  %551 = vxpose.xlu0.b32.cont [15/16] 0.0, 128
  %552 = vxpose.xlu0.b32.end [16/16] 0.0, 128
  %v553 = vpop.trf.xlu0
  %v554 = vpop.trf.xlu0
  %v555 = vpop.trf.xlu0
  %v556 = vpop.trf.xlu0
  %v557 = vpop.trf.xlu0
  %v558 = vpop.trf.xlu0
  %v559 = vpop.trf.xlu0
  %v560 = vpop.trf.xlu0
  %v561 = vpop.trf.xlu0
  %v562 = vpop.trf.xlu0
  %v563 = vpop.trf.xlu0
  %v564 = vpop.trf.xlu0
  %v565 = vpop.trf.xlu0
  %v566 = vpop.trf.xlu0
  %v567 = vpop.trf.xlu0
  %v568 = vpop.trf.xlu0
  %vm569 = vcmask 31744
  %570 = vst.msk [vmem:[%s11] sm:$0xff] %vm569, %v553
  %571 = vst.msk [vmem:[%s11 + $0x8] sm:$0xff] %vm569, %v554
  %572 = vst.msk [vmem:[%s11 + $0x10] sm:$0xff] %vm569, %v555
  %573 = vst.msk [vmem:[%s11 + $0x18] sm:$0xff] %vm569, %v556
  %574 = vst.msk [vmem:[%s11 + $0x20] sm:$0xff] %vm569, %v557
  %575 = vst.msk [vmem:[%s11 + $0x28] sm:$0xff] %vm569, %v558
  %576 = vst.msk [vmem:[%s11 + $0x30] sm:$0xff] %vm569, %v559
  %577 = vst.msk [vmem:[%s11 + $0x38] sm:$0xff] %vm569, %v560
  %578 = vst.msk [vmem:[%s11 + $0x40] sm:$0xff] %vm569, %v561
  %579 = vst.msk [vmem:[%s11 + $0x48] sm:$0xff] %vm569, %v562
  %580 = vst.msk [vmem:[%s11 + $0x50] sm:$0xff] %vm569, %v563
  %581 = vst.msk [vmem:[%s11 + $0x58] sm:$0xff] %vm569, %v564
  %582 = vst.msk [vmem:[%s11 + $0x60] sm:$0xff] %vm569, %v565
  %583 = vst.msk [vmem:[%s11 + $0x68] sm:$0xff] %vm569, %v566
  %584 = vst.msk [vmem:[%s11 + $0x70] sm:$0xff] %vm569, %v567
  %585 = vst.msk [vmem:[%s11 + $0x78] sm:$0xff] %vm569, %v568
  // Predicated region
  $region46: #{tpu_custom_call.1} parent=0 // pred_check
    _
  $region47: #{tpu_custom_call.1} parent=0 // pred_check_branch
    %587 = sbr.rel (0) target = $region49
  $region48: #{tpu_custom_call.1} parent=0 // pred_region
    _
  $region49: #{tpu_custom_call.1} parent=0 // pred_fallthru
    _
  // Predicated region
  $region50: #{tpu_custom_call.1} parent=0 // pred_check
    _
  $region51: #{tpu_custom_call.1} parent=0 // pred_check_branch
    %589 = sbr.rel (0) target = $region53
  $region52: #{tpu_custom_call.1} parent=0 // pred_region
    _
  $region53: #{tpu_custom_call.1} parent=0 // pred_fallthru
    _

</llo_original>
